<compile_context>
chip_gen: v6e
topology: v6e:2x2x1
jax: 0.10.0
libtpu: 0.0.40
codegen_flags: <defaults>
</compile_context>

<pallas_src>
import math

import jax
import jax.numpy as jnp
from jax.experimental import pallas as pl
from jax.experimental.pallas import tpu as pltpu


def _round_up(x: int, m: int) -> int:
    return ((x + m - 1) // m) * m


# --------------------------------------------------------------------------
# Separable bilinear (align_corners=True) interpolation matrix, matching
# torch F.interpolate(mode='bilinear', align_corners=True).
# --------------------------------------------------------------------------
def _interp_matrix(out_size: int, in_size: int) -> jnp.ndarray:
    if in_size == 1:
        return jnp.ones((out_size, 1), jnp.float32)
    if out_size == 1:
        return jnp.zeros((1, in_size), jnp.float32).at[0, 0].set(1.0)
    dst = jnp.arange(out_size, dtype=jnp.float32)
    src = dst * ((in_size - 1) / (out_size - 1))
    i0 = jnp.clip(jnp.floor(src).astype(jnp.int32), 0, in_size - 1)
    i1 = jnp.clip(i0 + 1, 0, in_size - 1)
    frac = src - i0.astype(jnp.float32)
    rows = jnp.arange(out_size)
    m = jnp.zeros((out_size, in_size), jnp.float32)
    m = m.at[rows, i0].add(1.0 - frac)
    m = m.at[rows, i1].add(frac)
    return m


# --------------------------------------------------------------------------
# Per-generation VMEM budgeting (v7x: 64 MiB physical, v5e/v6e: 128 MiB).
# --------------------------------------------------------------------------
def _vmem_budget_and_limit():
    try:
        cap = int(pltpu.get_tpu_info().vmem_capacity_bytes)
    except Exception:
        cap = 64 * 1024 * 1024          # assume the smallest (v7x per-TC)
    limit = min(cap * 3 // 4, 64 * 1024 * 1024)
    budget = min(cap * 35 // 100, 24 * 1024 * 1024)
    return budget, limit


def _choose_row_tile(H, W, h, w, c_lp, c_hp, c_out, in_is, out_is, n_batch,
                     budget_bytes, min_grid_steps=8, min_step_bytes=2 << 20):
    """Rows-per-tile R and padded height Hp (R | Hp, R*W % 128 == 0)."""
    # Lane density: R*W must be a multiple of 128; R itself a multiple of 8.
    r_align = max(8, 128 // math.gcd(W, 128))
    # VMEM held live per output row: double-buffered high/out/M_H blocks plus
    # the in-kernel f32 temporaries (accumulator, upsampled low, hardswish).
    per_row = (W * (2 * c_hp * in_is + 2 * c_out * out_is + (c_lp + 2 * c_out) * 4)
               + 2 * h * 4)
    fixed = (2 * c_lp * h * w * in_is          # resident low-res block (x2 bufs)
             + 2 * w * W * 4                   # M_W^T
             + 2 * (c_out * (c_lp + c_hp) + c_out) * 4
             + (1 << 20))                      # slack
    avail = max(budget_bytes - fixed, per_row * r_align)
    r = max(r_align, (avail // per_row) // r_align * r_align)
    r = min(r, _round_up(H, r_align))

    # Keep >= min_grid_steps total steps (pipelining / v7x megacore) as long as
    # each step still moves a healthy HBM slab (review: aim for >= ~2 MiB).
    tiles_wanted = max(1, -(-min_grid_steps // max(n_batch, 1)))
    r_small = max(r_align, _round_up(-(-H // tiles_wanted), r_align))
    if r_small < r and r_small * W * (c_hp * in_is + c_out * out_is) >= min_step_bytes:
        r = r_small

    hp = _round_up(H, r)
    return r, hp


# --------------------------------------------------------------------------
# Fused kernel: bilinear-upsample (low branch) + concat-free 1x1 conv + bias
# + Hardswish on a row tile of the output.
# --------------------------------------------------------------------------
def _ffm_fused_kernel(low_ref, high_ref, mh_ref, mwt_ref, wl_ref, wh_ref,
                      b_ref, o_ref):
    # low_ref : (1, C_lp, h, w)        high_ref: (1, C_hp, T)   T = R*W
    # mh_ref  : (R, h)  f32            mwt_ref : (w, W) f32
    # wl_ref  : (C_out, C_lp) f32      wh_ref  : (C_out, C_hp) input dtype
    # b_ref   : (C_out, 1) f32         o_ref   : (1, C_out, T)
    _, c_lp, _, _ = low_ref.shape
    r = mh_ref.shape[0]
    wo = mwt_ref.shape[1]
    t = r * wo

    # High branch: 1x1 conv on the native dtype (bf16-friendly), f32 accumulator.
    acc = jnp.dot(wh_ref[...], high_ref[0], preferred_element_type=jnp.float32)

    # Low branch: fused align_corners bilinear upsample of this row tile
    # (two small MXU matmuls per channel), flattened to the lane-dense spatial
    # layout, then the 1x1 conv over the low channels.
    mh = mh_ref[...]
    mwt = mwt_ref[...]
    ups = []
    for c in range(c_lp):                       # c_lp is small and static
        wi = jnp.dot(low_ref[0, c], mwt, preferred_element_type=jnp.float32)  # (h, W)
        zc = jnp.dot(mh, wi, preferred_element_type=jnp.float32)              # (R, W)
        ups.append(zc.reshape(1, t))
    low_up = jnp.concatenate(ups, axis=0)                                     # (C_lp, T)
    acc = acc + jnp.dot(wl_ref[...], low_up, preferred_element_type=jnp.float32)

    acc = acc + b_ref[...]
    # Hardswish: x * relu6(x + 3) / 6
    acc = acc * jnp.clip(acc + 3.0, 0.0, 6.0) * (1.0 / 6.0)
    o_ref[0] = acc.astype(o_ref.dtype)


# --------------------------------------------------------------------------
# Fallback kernel (unfused path): concat-free 1x1 conv + bias + Hardswish on
# already-upsampled inputs, same lane-dense tiling.
# --------------------------------------------------------------------------
def _ffm_conv_kernel(low_ref, high_ref, wl_ref, wh_ref, b_ref, o_ref):
    acc = jnp.dot(wl_ref[...], low_ref[0], preferred_element_type=jnp.float32)
    acc = acc + jnp.dot(wh_ref[...], high_ref[0], preferred_element_type=jnp.float32)
    acc = acc + b_ref[...]
    acc = acc * jnp.clip(acc + 3.0, 0.0, 6.0) * (1.0 / 6.0)
    o_ref[0] = acc.astype(o_ref.dtype)


# --------------------------------------------------------------------------
# Wrapper
# --------------------------------------------------------------------------
def hrv2ffm_forward(low_res, high_res, weight, bias, *,
                    vmem_budget_bytes=None, allow_fused=True):
    """Pallas forward of HRV2FFM.

    low_res:  (N, C_lp, h, w)
    high_res: (N, C_hp, H, W)
    weight:   (C_out, C_lp + C_hp)  -- 1x1 conv kernel (PyTorch (O,I,1,1) squeezed)
    bias:     (C_out,)
    returns:  (N, C_out, H, W) in high_res.dtype
    """
    n, c_lp, h, w = low_res.shape
    n2, c_hp, H, W = high_res.shape
    assert n == n2, "batch mismatch"
    c_out = weight.shape[0]
    assert weight.shape == (c_out, c_lp + c_hp)

    cdt = jnp.promote_types(low_res.dtype, high_res.dtype)
    out_dtype = high_res.dtype
    in_is = jnp.dtype(cdt).itemsize
    out_is = jnp.dtype(out_dtype).itemsize

    budget, vmem_limit = _vmem_budget_and_limit()
    if vmem_budget_bytes is not None:
        budget = int(vmem_budget_bytes)

    R, Hp = _choose_row_tile(H, W, h, w, c_lp, c_hp, c_out, in_is, out_is, n, budget)
    T = R * W
    grid = (n, Hp // R)

    # Separable align_corners interpolation matrices.
    m_h = _interp_matrix(H, h)                       # (H, h)
    m_wt = _interp_matrix(W, w).T                    # (w, W)
    if Hp > H:                                       # pad rows, slice afterwards
        m_h = jnp.pad(m_h, ((0, Hp - H), (0, 0)))
        high_p = jnp.pad(high_res, ((0, 0), (0, 0), (0, Hp - H), (0, 0)))
    else:
        high_p = high_res

    high_flat = high_p.astype(cdt).reshape(n, c_hp, Hp * W)
    w_high = weight[:, c_lp:].astype(cdt)            # native-dtype MXU operand
    b2d = bias.reshape(c_out, 1).astype(jnp.float32)

    compiler_params = pltpu.CompilerParams(
        dimension_semantics=("parallel", "parallel"),
        vmem_limit_bytes=int(vmem_limit))

    def _finish(out_flat):
        out = out_flat.reshape(n, c_out, Hp, W)
        return out[:, :, :H, :] if Hp > H else out

    if allow_fused:
        try:
            out_flat = pl.pallas_call(
                _ffm_fused_kernel,
                out_shape=jax.ShapeDtypeStruct((n, c_out, Hp * W), out_dtype),
                grid_spec=pltpu.PrefetchScalarGridSpec(
                    num_scalar_prefetch=0,
                    grid=grid,
                    in_specs=[
                        pl.BlockSpec((1, c_lp, h, w), lambda i, s: (i, 0, 0, 0)),
                        pl.BlockSpec((1, c_hp, T), lambda i, s: (i, 0, s)),
                        pl.BlockSpec((R, h), lambda i, s: (s, 0)),
                        pl.BlockSpec((w, W), lambda i, s: (0, 0)),
                        pl.BlockSpec((c_out, c_lp), lambda i, s: (0, 0)),
                        pl.BlockSpec((c_out, c_hp), lambda i, s: (0, 0)),
                        pl.BlockSpec((c_out, 1), lambda i, s: (0, 0)),
                    ],
                    out_specs=pl.BlockSpec((1, c_out, T), lambda i, s: (i, 0, s)),
                ),
                compiler_params=compiler_params,
            )(low_res.astype(cdt), high_flat, m_h, m_wt,
              weight[:, :c_lp].astype(jnp.float32), w_high, b2d)
            out_flat = jax.block_until_ready(out_flat)  # surface lowering errors here
            return _finish(out_flat)
        except Exception:
            # Mosaic on this jax build rejected something in the fused body
            # (most likely the in-kernel (R, W) -> (R*W,) flatten); fall back to
            # the unfused path below, which uses the same lane-dense tiling.
            pass

    # ---- Fallback: XLA align_corners upsample + Pallas concat-free conv ----
    low_up = jnp.einsum('Hh,nchw,wW->ncHW', m_h, low_res.astype(jnp.float32), m_wt)
    low_flat = low_up.astype(cdt).reshape(n, c_lp, Hp * W)
    out_flat = pl.pallas_call(
        _ffm_conv_kernel,
        out_shape=jax.ShapeDtypeStruct((n, c_out, Hp * W), out_dtype),
        grid_spec=pltpu.PrefetchScalarGridSpec(
            num_scalar_prefetch=0,
            grid=grid,
            in_specs=[
                pl.BlockSpec((1, c_lp, T), lambda i, s: (i, 0, s)),
                pl.BlockSpec((1, c_hp, T), lambda i, s: (i, 0, s)),
                pl.BlockSpec((c_out, c_lp), lambda i, s: (0, 0)),
                pl.BlockSpec((c_out, c_hp), lambda i, s: (0, 0)),
                pl.BlockSpec((c_out, 1), lambda i, s: (0, 0)),
            ],
            out_specs=pl.BlockSpec((1, c_out, T), lambda i, s: (i, 0, s)),
        ),
        compiler_params=compiler_params,
    )(low_flat, high_flat, weight[:, :c_lp].astype(cdt), w_high, b2d)
    return _finish(out_flat)


# --------------------------------------------------------------------------
# Self-test
# --------------------------------------------------------------------------
if __name__ == "__main__":
    def reference(low_res, high_res, weight, bias):
        _, _, h, w = low_res.shape
        _, _, H, W = high_res.shape
        m_h = _interp_matrix(H, h)
        m_w = _interp_matrix(W, w)
        low_up = jnp.einsum('Hh,nchw,Ww->ncHW', m_h,
                            low_res.astype(jnp.float32), m_w)
        x = jnp.concatenate([low_up, high_res.astype(jnp.float32)], axis=1)
        pre = (jnp.einsum('oc,nchw->nohw', weight.astype(jnp.float32), x)
               + bias.astype(jnp.float32)[None, :, None, None])
        return pre * jnp.clip(pre + 3.0, 0.0, 6.0) / 6.0

    def run_case(key, n, lp, hp, h, w, H, W, **kw):
        k1, k2, k3, k4 = jax.random.split(key, 4)
        out_chs = lp + hp
        low = jax.random.normal(k1, (n, lp, h, w), jnp.float32)
        high = jax.random.normal(k2, (n, hp, H, W), jnp.float32)
        weight = jax.random.normal(k3, (out_chs, lp + hp), jnp.float32) * 0.2
        bias = jax.random.normal(k4, (out_chs,), jnp.float32) * 0.1
        y = hrv2ffm_forward(low, high, weight, bias, **kw)
        y = jax.block_until_ready(y)
        y_ref = reference(low, high, weight, bias)
        assert y.shape == (n, out_chs, H, W) and y.dtype == high.dtype
        err = float(jnp.max(jnp.abs(y.astype(jnp.float32) - y_ref)))
        assert err < 1e-4, f"max abs err {err}"

    key = jax.random.PRNGKey(0)
    k1, k2 = jax.random.split(key)
    # Module-default config (lp=4, hp=4 -> out_chs=8), 2x bilinear upsample.
    run_case(k1, n=2, lp=4, hp=4, h=8, w=8, H=16, W=16)
    # Odd sizes: exercises row padding + multi-row-tile grid (tiny VMEM budget).
    run_case(k2, n=2, lp=3, hp=5, h=7, w=9, H=40, W=24,
             vmem_budget_bytes=1_150_000)

    print("KERNEL_OK")
</pallas_src>

<mosaic_0001>
module attributes {stable_mosaic.version = 11 : i64} {
  func.func @_ffm_fused_kernel(%arg0: i32, %arg1: i32, %arg2: memref<1x4x8x8xf32, #tpu.memory_space<vmem>>, %arg3: memref<1x4x256xf32, #tpu.memory_space<vmem>>, %arg4: memref<16x8xf32, #tpu.memory_space<vmem>>, %arg5: memref<8x16xf32, #tpu.memory_space<vmem>>, %arg6: memref<8x4xf32, #tpu.memory_space<vmem>>, %arg7: memref<8x4xf32, #tpu.memory_space<vmem>>, %arg8: memref<8x1xf32, #tpu.memory_space<vmem>>, %arg9: memref<1x8x256xf32, #tpu.memory_space<vmem>>) attributes {dimension_semantics = [#tpu.dimension_semantics<parallel>, #tpu.dimension_semantics<parallel>], iteration_bounds = array<i64: 2, 1>, scalar_prefetch = 0 : i64, scratch_operands = 0 : i64, tpu.core_type = #tpu.core_type<tc>, window_params = [{transform_indices = @transform_0, window_bounds = array<i64: 1, 4, 8, 8>}, {transform_indices = @transform_1, window_bounds = array<i64: 1, 4, 256>}, {transform_indices = @transform_2, window_bounds = array<i64: 16, 8>}, {pipeline_mode = #tpu.pipeline_mode<synchronous>, transform_indices = @transform_3, window_bounds = array<i64: 8, 16>}, {pipeline_mode = #tpu.pipeline_mode<synchronous>, transform_indices = @transform_4, window_bounds = array<i64: 8, 4>}, {pipeline_mode = #tpu.pipeline_mode<synchronous>, transform_indices = @transform_5, window_bounds = array<i64: 8, 4>}, {pipeline_mode = #tpu.pipeline_mode<synchronous>, transform_indices = @transform_6, window_bounds = array<i64: 8, 1>}, {transform_indices = @transform_7, window_bounds = array<i64: 1, 8, 256>}]} {
    %c0 = arith.constant 0 : index
    %c0_0 = arith.constant 0 : index
    %0 = vector.load %arg7[%c0, %c0_0] : memref<8x4xf32, #tpu.memory_space<vmem>>, vector<8x4xf32>
    %c0_1 = arith.constant 0 : index
    %c0_2 = arith.constant 0 : index
    %c0_3 = arith.constant 0 : index
    %1 = vector.load %arg3[%c0_1, %c0_2, %c0_3] : memref<1x4x256xf32, #tpu.memory_space<vmem>>, vector<1x4x256xf32>
    %2 = vector.shape_cast %1 : vector<1x4x256xf32> to vector<4x256xf32>
    %cst = arith.constant dense<0.000000e+00> : vector<8x256xf32>
    %3 = tpu.matmul %0, %2, %cst {dimension_numbers = #tpu.dot_dimension_numbers<[1], [0], [0], [1], [0, 0, 1, 1], [], []>} : vector<8x4xf32>, vector<4x256xf32>, vector<8x256xf32> -> vector<8x256xf32>
    %c0_4 = arith.constant 0 : index
    %c0_5 = arith.constant 0 : index
    %4 = vector.load %arg4[%c0_4, %c0_5] : memref<16x8xf32, #tpu.memory_space<vmem>>, vector<16x8xf32>
    %c0_6 = arith.constant 0 : index
    %c0_7 = arith.constant 0 : index
    %5 = vector.load %arg5[%c0_6, %c0_7] : memref<8x16xf32, #tpu.memory_space<vmem>>, vector<8x16xf32>
    %c0_8 = arith.constant 0 : index
    %c0_9 = arith.constant 0 : index
    %c0_10 = arith.constant 0 : index
    %c0_11 = arith.constant 0 : index
    %6 = vector.load %arg2[%c0_8, %c0_9, %c0_10, %c0_11] : memref<1x4x8x8xf32, #tpu.memory_space<vmem>>, vector<1x1x8x8xf32>
    %7 = vector.shape_cast %6 : vector<1x1x8x8xf32> to vector<8x8xf32>
    %cst_12 = arith.constant dense<0.000000e+00> : vector<8x16xf32>
    %8 = tpu.matmul %7, %5, %cst_12 {dimension_numbers = #tpu.dot_dimension_numbers<[1], [0], [0], [1], [0, 0, 1, 1], [], []>} : vector<8x8xf32>, vector<8x16xf32>, vector<8x16xf32> -> vector<8x16xf32>
    %cst_13 = arith.constant dense<0.000000e+00> : vector<16x16xf32>
    %9 = tpu.matmul %4, %8, %cst_13 {dimension_numbers = #tpu.dot_dimension_numbers<[1], [0], [0], [1], [0, 0, 1, 1], [], []>} : vector<16x8xf32>, vector<8x16xf32>, vector<16x16xf32> -> vector<16x16xf32>
    %10 = vector.shape_cast %9 : vector<16x16xf32> to vector<1x256xf32>
    %c0_14 = arith.constant 0 : index
    %c1 = arith.constant 1 : index
    %c0_15 = arith.constant 0 : index
    %c0_16 = arith.constant 0 : index
    %11 = vector.load %arg2[%c0_14, %c1, %c0_15, %c0_16] : memref<1x4x8x8xf32, #tpu.memory_space<vmem>>, vector<1x1x8x8xf32>
    %12 = vector.shape_cast %11 : vector<1x1x8x8xf32> to vector<8x8xf32>
    %cst_17 = arith.constant dense<0.000000e+00> : vector<8x16xf32>
    %13 = tpu.matmul %12, %5, %cst_17 {dimension_numbers = #tpu.dot_dimension_numbers<[1], [0], [0], [1], [0, 0, 1, 1], [], []>} : vector<8x8xf32>, vector<8x16xf32>, vector<8x16xf32> -> vector<8x16xf32>
    %cst_18 = arith.constant dense<0.000000e+00> : vector<16x16xf32>
    %14 = tpu.matmul %4, %13, %cst_18 {dimension_numbers = #tpu.dot_dimension_numbers<[1], [0], [0], [1], [0, 0, 1, 1], [], []>} : vector<16x8xf32>, vector<8x16xf32>, vector<16x16xf32> -> vector<16x16xf32>
    %15 = vector.shape_cast %14 : vector<16x16xf32> to vector<1x256xf32>
    %c0_19 = arith.constant 0 : index
    %c2 = arith.constant 2 : index
    %c0_20 = arith.constant 0 : index
    %c0_21 = arith.constant 0 : index
    %16 = vector.load %arg2[%c0_19, %c2, %c0_20, %c0_21] : memref<1x4x8x8xf32, #tpu.memory_space<vmem>>, vector<1x1x8x8xf32>
    %17 = vector.shape_cast %16 : vector<1x1x8x8xf32> to vector<8x8xf32>
    %cst_22 = arith.constant dense<0.000000e+00> : vector<8x16xf32>
    %18 = tpu.matmul %17, %5, %cst_22 {dimension_numbers = #tpu.dot_dimension_numbers<[1], [0], [0], [1], [0, 0, 1, 1], [], []>} : vector<8x8xf32>, vector<8x16xf32>, vector<8x16xf32> -> vector<8x16xf32>
    %cst_23 = arith.constant dense<0.000000e+00> : vector<16x16xf32>
    %19 = tpu.matmul %4, %18, %cst_23 {dimension_numbers = #tpu.dot_dimension_numbers<[1], [0], [0], [1], [0, 0, 1, 1], [], []>} : vector<16x8xf32>, vector<8x16xf32>, vector<16x16xf32> -> vector<16x16xf32>
    %20 = vector.shape_cast %19 : vector<16x16xf32> to vector<1x256xf32>
    %c0_24 = arith.constant 0 : index
    %c3 = arith.constant 3 : index
    %c0_25 = arith.constant 0 : index
    %c0_26 = arith.constant 0 : index
    %21 = vector.load %arg2[%c0_24, %c3, %c0_25, %c0_26] : memref<1x4x8x8xf32, #tpu.memory_space<vmem>>, vector<1x1x8x8xf32>
    %22 = vector.shape_cast %21 : vector<1x1x8x8xf32> to vector<8x8xf32>
    %cst_27 = arith.constant dense<0.000000e+00> : vector<8x16xf32>
    %23 = tpu.matmul %22, %5, %cst_27 {dimension_numbers = #tpu.dot_dimension_numbers<[1], [0], [0], [1], [0, 0, 1, 1], [], []>} : vector<8x8xf32>, vector<8x16xf32>, vector<8x16xf32> -> vector<8x16xf32>
    %cst_28 = arith.constant dense<0.000000e+00> : vector<16x16xf32>
    %24 = tpu.matmul %4, %23, %cst_28 {dimension_numbers = #tpu.dot_dimension_numbers<[1], [0], [0], [1], [0, 0, 1, 1], [], []>} : vector<16x8xf32>, vector<8x16xf32>, vector<16x16xf32> -> vector<16x16xf32>
    %25 = vector.shape_cast %24 : vector<16x16xf32> to vector<1x256xf32>
    %26 = tpu.concatenate %10, %15, %20, %25 in 0 : vector<1x256xf32>, vector<1x256xf32>, vector<1x256xf32>, vector<1x256xf32> -> vector<4x256xf32>
    %c0_29 = arith.constant 0 : index
    %c0_30 = arith.constant 0 : index
    %27 = vector.load %arg6[%c0_29, %c0_30] : memref<8x4xf32, #tpu.memory_space<vmem>>, vector<8x4xf32>
    %cst_31 = arith.constant dense<0.000000e+00> : vector<8x256xf32>
    %28 = tpu.matmul %27, %26, %cst_31 {dimension_numbers = #tpu.dot_dimension_numbers<[1], [0], [0], [1], [0, 0, 1, 1], [], []>} : vector<8x4xf32>, vector<4x256xf32>, vector<8x256xf32> -> vector<8x256xf32>
    %29 = arith.addf %3, %28 : vector<8x256xf32>
    %c0_32 = arith.constant 0 : index
    %c0_33 = arith.constant 0 : index
    %30 = vector.load %arg8[%c0_32, %c0_33] : memref<8x1xf32, #tpu.memory_space<vmem>>, vector<8x1xf32>
    %31 = vector.broadcast %30 : vector<8x1xf32> to vector<8x256xf32>
    %32 = arith.addf %29, %31 : vector<8x256xf32>
    %cst_34 = arith.constant 3.000000e+00 : f32
    %33 = vector.broadcast %cst_34 : f32 to vector<8x256xf32>
    %34 = arith.addf %32, %33 : vector<8x256xf32>
    %cst_35 = arith.constant 0.000000e+00 : f32
    %cst_36 = arith.constant 6.000000e+00 : f32
    %35 = vector.broadcast %cst_35 : f32 to vector<8x256xf32>
    %36 = arith.maximumf %35, %34 : vector<8x256xf32>
    %37 = vector.broadcast %cst_36 : f32 to vector<8x256xf32>
    %38 = arith.minimumf %37, %36 : vector<8x256xf32>
    %39 = arith.mulf %32, %38 : vector<8x256xf32>
    %cst_37 = arith.constant 0.166666672 : f32
    %40 = vector.broadcast %cst_37 : f32 to vector<8x256xf32>
    %41 = arith.mulf %39, %40 : vector<8x256xf32>
    %c0_38 = arith.constant 0 : index
    %c0_39 = arith.constant 0 : index
    %c0_40 = arith.constant 0 : index
    %42 = vector.load %arg9[%c0_38, %c0_39, %c0_40] : memref<1x8x256xf32, #tpu.memory_space<vmem>>, vector<1x8x256xf32>
    %43 = vector.shape_cast %42 : vector<1x8x256xf32> to vector<8x256xf32>
    %44 = vector.shape_cast %41 : vector<8x256xf32> to vector<1x8x256xf32>
    tpu.vector_store %arg9[%c0_38, %c0_39, %c0_40], %44 {strides = array<i32>} : memref<1x8x256xf32, #tpu.memory_space<vmem>>, vector<1x8x256xf32>,
    return
  }
  func.func @transform_0(%arg0: i32, %arg1: i32) -> (i32, i32, i32, i32) {
    %c0_i32 = arith.constant 0 : i32
    %c0_i32_0 = arith.constant 0 : i32
    %c0_i32_1 = arith.constant 0 : i32
    %c0_i32_2 = arith.constant 0 : i32
    return %arg0, %c0_i32, %c0_i32_0, %c0_i32_1 : i32, i32, i32, i32
  }
  func.func @transform_1(%arg0: i32, %arg1: i32) -> (i32, i32, i32) {
    %c0_i32 = arith.constant 0 : i32
    %c0_i32_0 = arith.constant 0 : i32
    return %arg0, %c0_i32, %arg1 : i32, i32, i32
  }
  func.func @transform_2(%arg0: i32, %arg1: i32) -> (i32, i32) {
    %c0_i32 = arith.constant 0 : i32
    %c0_i32_0 = arith.constant 0 : i32
    return %arg1, %c0_i32 : i32, i32
  }
  func.func @transform_3(%arg0: i32, %arg1: i32) -> (i32, i32) {
    %c0_i32 = arith.constant 0 : i32
    %c0_i32_0 = arith.constant 0 : i32
    %c0_i32_1 = arith.constant 0 : i32
    return %c0_i32, %c0_i32_0 : i32, i32
  }
  func.func @transform_4(%arg0: i32, %arg1: i32) -> (i32, i32) {
    %c0_i32 = arith.constant 0 : i32
    %c0_i32_0 = arith.constant 0 : i32
    %c0_i32_1 = arith.constant 0 : i32
    return %c0_i32, %c0_i32_0 : i32, i32
  }
  func.func @transform_5(%arg0: i32, %arg1: i32) -> (i32, i32) {
    %c0_i32 = arith.constant 0 : i32
    %c0_i32_0 = arith.constant 0 : i32
    %c0_i32_1 = arith.constant 0 : i32
    return %c0_i32, %c0_i32_0 : i32, i32
  }
  func.func @transform_6(%arg0: i32, %arg1: i32) -> (i32, i32) {
    %c0_i32 = arith.constant 0 : i32
    %c0_i32_0 = arith.constant 0 : i32
    %c0_i32_1 = arith.constant 0 : i32
    return %c0_i32, %c0_i32_0 : i32, i32
  }
  func.func @transform_7(%arg0: i32, %arg1: i32) -> (i32, i32, i32) {
    %c0_i32 = arith.constant 0 : i32
    %c0_i32_0 = arith.constant 0 : i32
    return %arg0, %c0_i32, %arg1 : i32, i32, i32
  }
}

module attributes {stable_mosaic.version = 11 : i64} {
  func.func @_ffm_conv_kernel(%arg0: i32, %arg1: i32, %arg2: memref<1x4x256xf32, #tpu.memory_space<vmem>>, %arg3: memref<1x4x256xf32, #tpu.memory_space<vmem>>, %arg4: memref<8x4xf32, #tpu.memory_space<vmem>>, %arg5: memref<8x4xf32, #tpu.memory_space<vmem>>, %arg6: memref<8x1xf32, #tpu.memory_space<vmem>>, %arg7: memref<1x8x256xf32, #tpu.memory_space<vmem>>) attributes {dimension_semantics = [#tpu.dimension_semantics<parallel>, #tpu.dimension_semantics<parallel>], iteration_bounds = array<i64: 2, 1>, scalar_prefetch = 0 : i64, scratch_operands = 0 : i64, tpu.core_type = #tpu.core_type<tc>, window_params = [{transform_indices = @transform_0, window_bounds = array<i64: 1, 4, 256>}, {transform_indices = @transform_1, window_bounds = array<i64: 1, 4, 256>}, {pipeline_mode = #tpu.pipeline_mode<synchronous>, transform_indices = @transform_2, window_bounds = array<i64: 8, 4>}, {pipeline_mode = #tpu.pipeline_mode<synchronous>, transform_indices = @transform_3, window_bounds = array<i64: 8, 4>}, {pipeline_mode = #tpu.pipeline_mode<synchronous>, transform_indices = @transform_4, window_bounds = array<i64: 8, 1>}, {transform_indices = @transform_5, window_bounds = array<i64: 1, 8, 256>}]} {
    %c0 = arith.constant 0 : index
    %c0_0 = arith.constant 0 : index
    %0 = vector.load %arg4[%c0, %c0_0] : memref<8x4xf32, #tpu.memory_space<vmem>>, vector<8x4xf32>
    %c0_1 = arith.constant 0 : index
    %c0_2 = arith.constant 0 : index
    %c0_3 = arith.constant 0 : index
    %1 = vector.load %arg2[%c0_1, %c0_2, %c0_3] : memref<1x4x256xf32, #tpu.memory_space<vmem>>, vector<1x4x256xf32>
    %2 = vector.shape_cast %1 : vector<1x4x256xf32> to vector<4x256xf32>
    %cst = arith.constant dense<0.000000e+00> : vector<8x256xf32>
    %3 = tpu.matmul %0, %2, %cst {dimension_numbers = #tpu.dot_dimension_numbers<[1], [0], [0], [1], [0, 0, 1, 1], [], []>} : vector<8x4xf32>, vector<4x256xf32>, vector<8x256xf32> -> vector<8x256xf32>
    %c0_4 = arith.constant 0 : index
    %c0_5 = arith.constant 0 : index
    %4 = vector.load %arg5[%c0_4, %c0_5] : memref<8x4xf32, #tpu.memory_space<vmem>>, vector<8x4xf32>
    %c0_6 = arith.constant 0 : index
    %c0_7 = arith.constant 0 : index
    %c0_8 = arith.constant 0 : index
    %5 = vector.load %arg3[%c0_6, %c0_7, %c0_8] : memref<1x4x256xf32, #tpu.memory_space<vmem>>, vector<1x4x256xf32>
    %6 = vector.shape_cast %5 : vector<1x4x256xf32> to vector<4x256xf32>
    %cst_9 = arith.constant dense<0.000000e+00> : vector<8x256xf32>
    %7 = tpu.matmul %4, %6, %cst_9 {dimension_numbers = #tpu.dot_dimension_numbers<[1], [0], [0], [1], [0, 0, 1, 1], [], []>} : vector<8x4xf32>, vector<4x256xf32>, vector<8x256xf32> -> vector<8x256xf32>
    %8 = arith.addf %3, %7 : vector<8x256xf32>
    %c0_10 = arith.constant 0 : index
    %c0_11 = arith.constant 0 : index
    %9 = vector.load %arg6[%c0_10, %c0_11] : memref<8x1xf32, #tpu.memory_space<vmem>>, vector<8x1xf32>
    %10 = vector.broadcast %9 : vector<8x1xf32> to vector<8x256xf32>
    %11 = arith.addf %8, %10 : vector<8x256xf32>
    %cst_12 = arith.constant 3.000000e+00 : f32
    %12 = vector.broadcast %cst_12 : f32 to vector<8x256xf32>
    %13 = arith.addf %11, %12 : vector<8x256xf32>
    %cst_13 = arith.constant 0.000000e+00 : f32
    %cst_14 = arith.constant 6.000000e+00 : f32
    %14 = vector.broadcast %cst_13 : f32 to vector<8x256xf32>
    %15 = arith.maximumf %14, %13 : vector<8x256xf32>
    %16 = vector.broadcast %cst_14 : f32 to vector<8x256xf32>
    %17 = arith.minimumf %16, %15 : vector<8x256xf32>
    %18 = arith.mulf %11, %17 : vector<8x256xf32>
    %cst_15 = arith.constant 0.166666672 : f32
    %19 = vector.broadcast %cst_15 : f32 to vector<8x256xf32>
    %20 = arith.mulf %18, %19 : vector<8x256xf32>
    %c0_16 = arith.constant 0 : index
    %c0_17 = arith.constant 0 : index
    %c0_18 = arith.constant 0 : index
    %21 = vector.load %arg7[%c0_16, %c0_17, %c0_18] : memref<1x8x256xf32, #tpu.memory_space<vmem>>, vector<1x8x256xf32>
    %22 = vector.shape_cast %21 : vector<1x8x256xf32> to vector<8x256xf32>
    %23 = vector.shape_cast %20 : vector<8x256xf32> to vector<1x8x256xf32>
    tpu.vector_store %arg7[%c0_16, %c0_17, %c0_18], %23 {strides = array<i32>} : memref<1x8x256xf32, #tpu.memory_space<vmem>>, vector<1x8x256xf32>,
    return
  }
  func.func @transform_0(%arg0: i32, %arg1: i32) -> (i32, i32, i32) {
    %c0_i32 = arith.constant 0 : i32
    %c0_i32_0 = arith.constant 0 : i32
    return %arg0, %c0_i32, %arg1 : i32, i32, i32
  }
  func.func @transform_1(%arg0: i32, %arg1: i32) -> (i32, i32, i32) {
    %c0_i32 = arith.constant 0 : i32
    %c0_i32_0 = arith.constant 0 : i32
    return %arg0, %c0_i32, %arg1 : i32, i32, i32
  }
  func.func @transform_2(%arg0: i32, %arg1: i32) -> (i32, i32) {
    %c0_i32 = arith.constant 0 : i32
    %c0_i32_0 = arith.constant 0 : i32
    %c0_i32_1 = arith.constant 0 : i32
    return %c0_i32, %c0_i32_0 : i32, i32
  }
  func.func @transform_3(%arg0: i32, %arg1: i32) -> (i32, i32) {
    %c0_i32 = arith.constant 0 : i32
    %c0_i32_0 = arith.constant 0 : i32
    %c0_i32_1 = arith.constant 0 : i32
    return %c0_i32, %c0_i32_0 : i32, i32
  }
  func.func @transform_4(%arg0: i32, %arg1: i32) -> (i32, i32) {
    %c0_i32 = arith.constant 0 : i32
    %c0_i32_0 = arith.constant 0 : i32
    %c0_i32_1 = arith.constant 0 : i32
    return %c0_i32, %c0_i32_0 : i32, i32
  }
  func.func @transform_5(%arg0: i32, %arg1: i32) -> (i32, i32, i32) {
    %c0_i32 = arith.constant 0 : i32
    %c0_i32_0 = arith.constant 0 : i32
    return %arg0, %c0_i32, %arg1 : i32, i32, i32
  }
}

</mosaic_0001>

<llo_original>
// kernel: tpu_custom_call.1
$region0: #{tpu_custom_call.1}
  #allocation0 [shape = 'u32[]', space=smem, size = 0x4, offset = 0x4, fixed_abs, tag = 'smem constant byte address 0x4 - core index']
  #allocation1 [shape = 'u32[144,128]{1,0:T(1,128)}', space=vmem, size = 0x12000, scoped, tag = 'internal scratch']
  %s0 = inlined_call_operand.vmem [shape: f32[2,4,256], index: 0, kind: input, shape index: {}]
  %s1 = inlined_call_operand.vmem [shape: f32[2,4,256], index: 1, kind: input, shape index: {}]
  %s2 = inlined_call_operand.vmem [shape: f32[8,4], index: 2, kind: input, shape index: {}]
  %s3 = inlined_call_operand.vmem [shape: f32[8,4], index: 3, kind: input, shape index: {}]
  %s4 = inlined_call_operand.vmem [shape: f32[8,1], index: 4, kind: input, shape index: {}]
  %s5 = inlined_call_operand.hbm [shape: f32[2,8,256], index: 5, kind: output, shape index: {}]
  %s6 = sld [smem:[#allocation0]]
  $region53: #{tpu_custom_call.1} parent=0
    _
  %s8 = ssub.s32 1, %s6
  %s9 = scalar_select 0, %s8, %s6
  $region1: #{tpu_custom_call.1} parent=0
    #allocation2 [shape = 'u8[16384]{0}', space=vmem, size = 0x4000, scoped, tag = 'output window, operand 0']
    #allocation3 [shape = 's32[2]{0}', space=sflag, size = 0x8, scoped, tag = 'scoped memory for tpu_custom_call.1']
    %10 = vsyncpa [#allocation3], 0
    %s11 = scalar_lea.sflag [#allocation3], 1
    %12 = vsyncpa %s11, 0
    loop: start=0, step=1, limit=4
    $region2: #{tpu_custom_call.1} parent=1 // loop_pre_header
      _
    $region3: #{tpu_custom_call.1} parent=1 // loop_header
      %s14 = sphi 0, %s18
      %p15 = scmp.ge.s32.totalorder %s14, 4
      %s21 = sphi 0, %s33
      %s22 = sphi 0, %s29
      %s23 = sphi 0, %s21
      %s24 = sphi 0, %s22
      %s25 = sphi 0, %s23
      %s26 = sphi 0, %s24
      %s38 = sphi 0, %s40
      %s41 = sphi 0, %s38
      %s42 = sphi 0, %s41
      %s58 = sphi 0, %s42
      %s66 = sphi 0, %s68
      %s69 = sphi 0, %s66
      %s70 = sphi 0, %s69
      %s86 = sphi 0, %s70
      %s90 = sphi 0, %s90
      %s92 = sphi 0, %s90
      %s93 = sphi 0, %s92
      %s107 = sphi 0, %s93
      %s111 = sphi 0, %s111
      %s113 = sphi 0, %s111
      %s114 = sphi 0, %s113
      %s128 = sphi 0, %s114
      %s132 = sphi 0, %s132
      %s134 = sphi 0, %s132
      %s135 = sphi 0, %s134
      %s149 = sphi 0, %s135
      %s157 = sphi 0, %s159
      %s160 = sphi 0, %s157
      %s161 = sphi 0, %s160
      %s177 = sphi 0, %s161
    $region4: #{tpu_custom_call.1} parent=1 // loop_header_branch
      %17 = sbr.rel (%p15) target = $region8
    $region5: #{tpu_custom_call.1} parent=1 // loop_body
      %s19 = ssub.s32 %s14, 1
      %s20 = ssub.s32 %s14, 2
      %s27 = sadd.s32 1, %s22
      %p28 = scmp.ge.s32.totalorder %s27, 1
      %s29 = scalar_select %p28, 0, %s27
      %s30 = sadd.s32 1, %s21
      %s31 = scalar_select %p28, %s30, %s21
      %p32 = scmp.ge.s32.totalorder %s31, 2
      %s33 = scalar_select %p32, 0, %s31
      %s34 = ssub.s32 %s21, %s33
      %s35 = ssub.s32 %s22, %s29
      %s36 = sor.u32 %s34, %s35
      %p37 = scmp.eq.s32.totalorder %s36, 0
      %s39 = sadd.s32 %s38, 1
      %s40 = scalar_select %p37, %s38, %s39
      %p43 = pneg %p37
      %p44 = scmp.eq.s32.totalorder %s14, 1
      %p45 = por %p43, %p44
      %p46 = scmp.ne.s32.totalorder %s38, %s41
      %p47 = scmp.eq.s32.totalorder %s14, 0
      %p48 = por %p46, %p47
      %p49 = scmp.ne.s32.totalorder %s38, %s41
      %p50 = scmp.eq.s32.totalorder %s19, 1
      %p51 = por %p49, %p50
      %p52 = scmp.ne.s32.totalorder %s41, %s42
      %p53 = scmp.eq.s32.totalorder %s19, 0
      %p54 = por %p52, %p53
      %p55 = scmp.ne.s32.totalorder %s41, %s42
      %p56 = scmp.eq.s32.totalorder %s20, 1
      %p57 = por %p55, %p56
      %p59 = scmp.ne.s32.totalorder %s42, %s58
      %p60 = scmp.eq.s32.totalorder %s20, 0
      %p61 = por %p59, %p60
      %s62 = ssub.s32 %s21, %s33
      %s63 = ssub.s32 %s22, %s29
      %s64 = sor.u32 %s62, %s63
      %p65 = scmp.eq.s32.totalorder %s64, 0
      %s67 = sadd.s32 %s66, 1
      %s68 = scalar_select %p65, %s66, %s67
      %p71 = pneg %p65
      %p72 = scmp.eq.s32.totalorder %s14, 1
      %p73 = por %p71, %p72
      %p74 = scmp.ne.s32.totalorder %s66, %s69
      %p75 = scmp.eq.s32.totalorder %s14, 0
      %p76 = por %p74, %p75
      %p77 = scmp.ne.s32.totalorder %s66, %s69
      %p78 = scmp.eq.s32.totalorder %s19, 1
      %p79 = por %p77, %p78
      %p80 = scmp.ne.s32.totalorder %s69, %s70
      %p81 = scmp.eq.s32.totalorder %s19, 0
      %p82 = por %p80, %p81
      %p83 = scmp.ne.s32.totalorder %s69, %s70
      %p84 = scmp.eq.s32.totalorder %s20, 1
      %p85 = por %p83, %p84
      %p87 = scmp.ne.s32.totalorder %s70, %s86
      %p88 = scmp.eq.s32.totalorder %s20, 0
      %p89 = por %p87, %p88
      %s91 = sadd.s32 %s90, 1
      %p94 = scmp.eq.s32.totalorder %s14, 1
      %p95 = scmp.ne.s32.totalorder %s90, %s92
      %p96 = scmp.eq.s32.totalorder %s14, 0
      %p97 = por %p95, %p96
      %p98 = scmp.ne.s32.totalorder %s90, %s92
      %p99 = scmp.eq.s32.totalorder %s19, 1
      %p100 = por %p98, %p99
      %p101 = scmp.ne.s32.totalorder %s92, %s93
      %p102 = scmp.eq.s32.totalorder %s19, 0
      %p103 = por %p101, %p102
      %p104 = scmp.ne.s32.totalorder %s92, %s93
      %p105 = scmp.eq.s32.totalorder %s20, 1
      %p106 = por %p104, %p105
      %p108 = scmp.ne.s32.totalorder %s93, %s107
      %p109 = scmp.eq.s32.totalorder %s20, 0
      %p110 = por %p108, %p109
      %s112 = sadd.s32 %s111, 1
      %p115 = scmp.eq.s32.totalorder %s14, 1
      %p116 = scmp.ne.s32.totalorder %s111, %s113
      %p117 = scmp.eq.s32.totalorder %s14, 0
      %p118 = por %p116, %p117
      %p119 = scmp.ne.s32.totalorder %s111, %s113
      %p120 = scmp.eq.s32.totalorder %s19, 1
      %p121 = por %p119, %p120
      %p122 = scmp.ne.s32.totalorder %s113, %s114
      %p123 = scmp.eq.s32.totalorder %s19, 0
      %p124 = por %p122, %p123
      %p125 = scmp.ne.s32.totalorder %s113, %s114
      %p126 = scmp.eq.s32.totalorder %s20, 1
      %p127 = por %p125, %p126
      %p129 = scmp.ne.s32.totalorder %s114, %s128
      %p130 = scmp.eq.s32.totalorder %s20, 0
      %p131 = por %p129, %p130
      %s133 = sadd.s32 %s132, 1
      %p136 = scmp.eq.s32.totalorder %s14, 1
      %p137 = scmp.ne.s32.totalorder %s132, %s134
      %p138 = scmp.eq.s32.totalorder %s14, 0
      %p139 = por %p137, %p138
      %p140 = scmp.ne.s32.totalorder %s132, %s134
      %p141 = scmp.eq.s32.totalorder %s19, 1
      %p142 = por %p140, %p141
      %p143 = scmp.ne.s32.totalorder %s134, %s135
      %p144 = scmp.eq.s32.totalorder %s19, 0
      %p145 = por %p143, %p144
      %p146 = scmp.ne.s32.totalorder %s134, %s135
      %p147 = scmp.eq.s32.totalorder %s20, 1
      %p148 = por %p146, %p147
      %p150 = scmp.ne.s32.totalorder %s135, %s149
      %p151 = scmp.eq.s32.totalorder %s20, 0
      %p152 = por %p150, %p151
      %s153 = ssub.s32 %s21, %s33
      %s154 = ssub.s32 %s22, %s29
      %s155 = sor.u32 %s153, %s154
      %p156 = scmp.eq.s32.totalorder %s155, 0
      %s158 = sadd.s32 %s157, 1
      %s159 = scalar_select %p156, %s157, %s158
      %p162 = pneg %p156
      %p163 = scmp.eq.s32.totalorder %s14, 1
      %p164 = por %p162, %p163
      %p165 = scmp.ne.s32.totalorder %s157, %s160
      %p166 = scmp.eq.s32.totalorder %s14, 0
      %p167 = por %p165, %p166
      %p168 = scmp.ne.s32.totalorder %s157, %s160
      %p169 = scmp.eq.s32.totalorder %s19, 1
      %p170 = por %p168, %p169
      %p171 = scmp.ne.s32.totalorder %s160, %s161
      %p172 = scmp.eq.s32.totalorder %s19, 0
      %p173 = por %p171, %p172
      %p174 = scmp.ne.s32.totalorder %s160, %s161
      %p175 = scmp.eq.s32.totalorder %s20, 1
      %p176 = por %p174, %p175
      %p178 = scmp.ne.s32.totalorder %s161, %s177
      %p179 = scmp.eq.s32.totalorder %s20, 0
      %p180 = por %p178, %p179
      %p181 = scmp.le.s32.totalorder 1, %s14
      %p182 = scmp.lt.s32.totalorder %s14, 3
      %p183 = pnand %p181, %p182
      %p184 = pneg %p183
      // Predicated region
      $region9: #{tpu_custom_call.1} parent=5 // pred_check
        _
      $region10: #{tpu_custom_call.1} parent=5 // pred_check_branch
        %186 = sbr.rel (%p183) target = $region12
      $region11: #{tpu_custom_call.1} parent=5 // pred_region
        %s187 = ssub.s32 %s14, 1
        // Predicated region
        $region13: #{tpu_custom_call.1} parent=11 // pred_check
          %p188 = pneg %p103
        $region14: #{tpu_custom_call.1} parent=11 // pred_check_branch
          %190 = sbr.rel (%p188) target = $region16
        $region15: #{tpu_custom_call.1} parent=11 // pred_region
          _
        $region16: #{tpu_custom_call.1} parent=11 // pred_fallthru
          _
        // Predicated region
        $region17: #{tpu_custom_call.1} parent=11 // pred_check
          %p191 = pneg %p124
        $region18: #{tpu_custom_call.1} parent=11 // pred_check_branch
          %193 = sbr.rel (%p191) target = $region20
        $region19: #{tpu_custom_call.1} parent=11 // pred_region
          _
        $region20: #{tpu_custom_call.1} parent=11 // pred_fallthru
          _
        // Predicated region
        $region21: #{tpu_custom_call.1} parent=11 // pred_check
          %p194 = pneg %p145
        $region22: #{tpu_custom_call.1} parent=11 // pred_check_branch
          %196 = sbr.rel (%p194) target = $region24
        $region23: #{tpu_custom_call.1} parent=11 // pred_region
          _
        $region24: #{tpu_custom_call.1} parent=11 // pred_fallthru
          _
      $region12: #{tpu_custom_call.1} parent=5 // pred_fallthru
        _
      %p197 = scmp.lt.s32.totalorder %s14, 2
      // Predicated region
      $region25: #{tpu_custom_call.1} parent=5 // pred_check
        %p198 = pneg %p197
      $region26: #{tpu_custom_call.1} parent=5 // pred_check_branch
        %200 = sbr.rel (%p198) target = $region28
      $region27: #{tpu_custom_call.1} parent=5 // pred_region
        // Predicated region
        $region29: #{tpu_custom_call.1} parent=27 // pred_check
          %p201 = pneg %p48
        $region30: #{tpu_custom_call.1} parent=27 // pred_check_branch
          %203 = sbr.rel (%p201) target = $region32
        $region31: #{tpu_custom_call.1} parent=27 // pred_region
          %s204 = smul.u32 2, %s22
          %p205 = scmp.lt.s32.totalorder %s21, 1
          %s206 = scalar_select %p205, %s21, 1
          %p207 = scmp.lt.s32.totalorder %s204, 1
          %s208 = scalar_select %p207, %s204, 1
          %s209 = smul.addr %s206, 2
          %s210 = sadd.s32 %s208, %s209
          %s211 = smul.addr %s210, 4
          %s212 = scalar_lea.vmem %s0, %s211
          %s213 = smul.u32 2, %s22
        $region32: #{tpu_custom_call.1} parent=27 // pred_fallthru
          _
        // Predicated region
        $region33: #{tpu_custom_call.1} parent=27 // pred_check
          %p214 = pneg %p76
        $region34: #{tpu_custom_call.1} parent=27 // pred_check_branch
          %216 = sbr.rel (%p214) target = $region36
        $region35: #{tpu_custom_call.1} parent=27 // pred_region
          %s217 = smul.u32 2, %s22
          %p218 = scmp.lt.s32.totalorder %s21, 1
          %s219 = scalar_select %p218, %s21, 1
          %p220 = scmp.lt.s32.totalorder %s217, 1
          %s221 = scalar_select %p220, %s217, 1
          %s222 = smul.addr %s219, 2
          %s223 = sadd.s32 %s221, %s222
          %s224 = smul.addr %s223, 4
          %s225 = scalar_lea.vmem %s1, %s224
          %s226 = smul.u32 2, %s22
        $region36: #{tpu_custom_call.1} parent=27 // pred_fallthru
          _
      $region28: #{tpu_custom_call.1} parent=5 // pred_fallthru
        _
      %p227 = scmp.le.s32.totalorder 1, %s14
      %p228 = scmp.lt.s32.totalorder %s14, 3
      %p229 = pnand %p227, %p228
      %p230 = pneg %p229
      // Predicated region
      $region37: #{tpu_custom_call.1} parent=5 // pred_check
        _
      $region38: #{tpu_custom_call.1} parent=5 // pred_check_branch
        %232 = sbr.rel (%p229) target = $region40
      $region39: #{tpu_custom_call.1} parent=5 // pred_region
        %s233 = ssub.s32 %s14, 1
        %s234 = smul.u32 2, %s24
        %p235 = scmp.lt.s32.totalorder %s23, 1
        %s236 = scalar_select %p235, %s23, 1
        %p237 = scmp.lt.s32.totalorder %s234, 1
        %s238 = scalar_select %p237, %s234, 1
        %s239 = smul.addr %s236, 2
        %s240 = sadd.s32 %s238, %s239
        %s241 = smul.addr %s240, 4
        %s242 = scalar_lea.vmem %s0, %s241
        %p243 = pneg %p54
        %p244 = pneg %p51
        %s245 = smul.u32 2, %s24
        %p246 = scmp.lt.s32.totalorder %s23, 1
        %s247 = scalar_select %p246, %s23, 1
        %p248 = scmp.lt.s32.totalorder %s245, 1
        %s249 = scalar_select %p248, %s245, 1
        %s250 = smul.addr %s247, 2
        %s251 = sadd.s32 %s249, %s250
        %s252 = smul.addr %s251, 4
        %s253 = scalar_lea.vmem %s1, %s252
        %p254 = pneg %p82
        %p255 = pneg %p79
        %p256 = pneg %p103
        %p257 = pneg %p100
        %p258 = pneg %p124
        %p259 = pneg %p121
        %p260 = pneg %p145
        %p261 = pneg %p142
        %p262 = pneg %p173
        %p263 = pneg %p170
        %s264 = sand.u32 %s160, 1
        %s265 = scalar_lea.sflag [#allocation3], %s264
        %s266 = sand.u32 %s160, 1
        %s267 = smul.addr %s266, 16
        %s268 = scalar_lea.vmem [#allocation2], %s267
        %s269 = smul.u32 2, %s24
        %p270 = scmp.lt.s32.totalorder %s23, 1
        %s271 = scalar_select %p270, %s23, 1
        %p272 = scmp.lt.s32.totalorder %s269, 1
        %s273 = scalar_select %p272, %s269, 1
        %s274 = smul.addr %s271, 2
        %s275 = sadd.s32 %s273, %s274
        %s276 = smul.addr %s275, 4
        %s277 = scalar_lea.vmem %s0, %s276
        %s278 = smul.u32 2, %s24
        %s279 = smul.u32 2, %s24
        %p280 = scmp.lt.s32.totalorder %s23, 1
        %s281 = scalar_select %p280, %s23, 1
        %p282 = scmp.lt.s32.totalorder %s279, 1
        %s283 = scalar_select %p282, %s279, 1
        %s284 = smul.addr %s281, 2
        %s285 = sadd.s32 %s283, %s284
        %s286 = smul.addr %s285, 4
        %s287 = scalar_lea.vmem %s1, %s286
        %s288 = smul.u32 2, %s24
        %s289 = smul.u32 2, %s24
        %v290 = vld [vmem:[%s2] sm:$0xff]
        %v291 = vld [vmem:[%s277] sm:$0xff]
        %v292 = vld [vmem:[%s3] sm:$0xff]
        %v293 = vld [vmem:[%s287] sm:$0xff]
        %v295 = vcombine.high %v293, %v293
        %vm296 = vcmask 31744
        %v298 = vsel %vm296, %v292, 0
        %vm300 = vcmask 1043456
        %v301 = vsel %vm300, %v293, 0
        %v303 = vsel %vm300, %v295, 0
        %305 = vmatprep.subr.mxu0 0.0
        %306 = vmatpush1.msra.mxu0 0.0
        %307 = vmatprep.subr.mxu0 0.0
        %308 = vmatpush1.msra.mxu0 0.0
        %309 = vmatprep.subr.mxu0 0.0
        %310 = vmatpush1.msra.mxu0 0.0
        %311 = vmatprep.subr.mxu0 0.0
        %312 = vmatpush1.msra.mxu0 0.0
        %313 = vmatprep.subr.mxu0 0.0
        %314 = vmatpush1.msra.mxu0 0.0
        %315 = vmatprep.subr.mxu0 0.0
        %316 = vmatpush1.msra.mxu0 0.0
        %317 = vmatprep.subr.mxu0 0.0
        %318 = vmatpush1.msra.mxu0 0.0
        %319 = vmatprep.subr.mxu0 0.0
        %320 = vmatpush1.msra.mxu0 0.0
        %321 = vmatprep.subr.mxu0 0.0
        %322 = vmatpush1.msra.mxu0 0.0
        %323 = vmatprep.subr.mxu0 0.0
        %324 = vmatpush1.msra.mxu0 0.0
        %325 = vmatprep.subr.mxu0 0.0
        %326 = vmatpush1.msra.mxu0 0.0
        %327 = vmatprep.subr.mxu0 0.0
        %328 = vmatpush1.msra.mxu0 0.0
        %329 = vmatprep.subr.mxu0 0.0
        %330 = vmatpush1.msra.mxu0 0.0
        %331 = vmatprep.subr.mxu0 0.0
        %332 = vmatpush1.msra.mxu0 0.0
        %333 = vmatprep.subr.mxu0 0.0
        %334 = vmatpush1.msra.mxu0 0.0
        %335 = vmatprep.subr.mxu0 %v303
        %336 = vmatpush1.msra.mxu0 %v301
        %337 = vmatprep.subr.mxu0 0.0
        %338 = vmatpush2.msra.mxu0 0.0
        %339 = vmatprep.subr.mxu0 0.0
        %340 = vmatpush2.msra.mxu0 0.0
        %341 = vmatprep.subr.mxu0 0.0
        %342 = vmatpush2.msra.mxu0 0.0
        %343 = vmatprep.subr.mxu0 0.0
        %344 = vmatpush2.msra.mxu0 0.0
        %345 = vmatprep.subr.mxu0 0.0
        %346 = vmatpush2.msra.mxu0 0.0
        %347 = vmatprep.subr.mxu0 0.0
        %348 = vmatpush2.msra.mxu0 0.0
        %349 = vmatprep.subr.mxu0 0.0
        %350 = vmatpush2.msra.mxu0 0.0
        %351 = vmatprep.subr.mxu0 0.0
        %352 = vmatpush2.msra.mxu0 0.0
        %353 = vmatprep.subr.mxu0 0.0
        %354 = vmatpush2.msra.mxu0 0.0
        %355 = vmatprep.subr.mxu0 0.0
        %356 = vmatpush2.msra.mxu0 0.0
        %357 = vmatprep.subr.mxu0 0.0
        %358 = vmatpush2.msra.mxu0 0.0
        %359 = vmatprep.subr.mxu0 0.0
        %360 = vmatpush2.msra.mxu0 0.0
        %361 = vmatprep.subr.mxu0 0.0
        %362 = vmatpush2.msra.mxu0 0.0
        %363 = vmatprep.subr.mxu0 0.0
        %364 = vmatpush2.msra.mxu0 0.0
        %365 = vmatprep.subr.mxu0 0.0
        %366 = vmatpush2.msra.mxu0 0.0
        %367 = vmatprep.subr.mxu0 0.0
        %368 = vmatpush2.msra.mxu0 0.0
        %369 = vmatprep.mubr.f32.mxu0 0.0
        %370 = vmatmul.mubr.f32.gmra.mxu0 %v298
        %v371 = vpop.f32.mrf.mxu0
        %v372 = vadd.f32 0.0, %v371
        %v373 = vpop.f32.mrf.mxu0
        %v374 = vadd.f32 0.0, %v373
        %375 = vdwg.mxu0
        %v377 = vcombine.high %v291, %v291
        %v379 = vsel %vm296, %v290, 0
        %v381 = vsel %vm300, %v291, 0
        %v383 = vsel %vm300, %v377, 0
        %385 = vmatprep.subr.mxu0 0.0
        %386 = vmatpush1.msra.mxu0 0.0
        %387 = vmatprep.subr.mxu0 0.0
        %388 = vmatpush1.msra.mxu0 0.0
        %389 = vmatprep.subr.mxu0 0.0
        %390 = vmatpush1.msra.mxu0 0.0
        %391 = vmatprep.subr.mxu0 0.0
        %392 = vmatpush1.msra.mxu0 0.0
        %393 = vmatprep.subr.mxu0 0.0
        %394 = vmatpush1.msra.mxu0 0.0
        %395 = vmatprep.subr.mxu0 0.0
        %396 = vmatpush1.msra.mxu0 0.0
        %397 = vmatprep.subr.mxu0 0.0
        %398 = vmatpush1.msra.mxu0 0.0
        %399 = vmatprep.subr.mxu0 0.0
        %400 = vmatpush1.msra.mxu0 0.0
        %401 = vmatprep.subr.mxu0 0.0
        %402 = vmatpush1.msra.mxu0 0.0
        %403 = vmatprep.subr.mxu0 0.0
        %404 = vmatpush1.msra.mxu0 0.0
        %405 = vmatprep.subr.mxu0 0.0
        %406 = vmatpush1.msra.mxu0 0.0
        %407 = vmatprep.subr.mxu0 0.0
        %408 = vmatpush1.msra.mxu0 0.0
        %409 = vmatprep.subr.mxu0 0.0
        %410 = vmatpush1.msra.mxu0 0.0
        %411 = vmatprep.subr.mxu0 0.0
        %412 = vmatpush1.msra.mxu0 0.0
        %413 = vmatprep.subr.mxu0 0.0
        %414 = vmatpush1.msra.mxu0 0.0
        %415 = vmatprep.subr.mxu0 %v383
        %416 = vmatpush1.msra.mxu0 %v381
        %417 = vmatprep.subr.mxu0 0.0
        %418 = vmatpush2.msra.mxu0 0.0
        %419 = vmatprep.subr.mxu0 0.0
        %420 = vmatpush2.msra.mxu0 0.0
        %421 = vmatprep.subr.mxu0 0.0
        %422 = vmatpush2.msra.mxu0 0.0
        %423 = vmatprep.subr.mxu0 0.0
        %424 = vmatpush2.msra.mxu0 0.0
        %425 = vmatprep.subr.mxu0 0.0
        %426 = vmatpush2.msra.mxu0 0.0
        %427 = vmatprep.subr.mxu0 0.0
        %428 = vmatpush2.msra.mxu0 0.0
        %429 = vmatprep.subr.mxu0 0.0
        %430 = vmatpush2.msra.mxu0 0.0
        %431 = vmatprep.subr.mxu0 0.0
        %432 = vmatpush2.msra.mxu0 0.0
        %433 = vmatprep.subr.mxu0 0.0
        %434 = vmatpush2.msra.mxu0 0.0
        %435 = vmatprep.subr.mxu0 0.0
        %436 = vmatpush2.msra.mxu0 0.0
        %437 = vmatprep.subr.mxu0 0.0
        %438 = vmatpush2.msra.mxu0 0.0
        %439 = vmatprep.subr.mxu0 0.0
        %440 = vmatpush2.msra.mxu0 0.0
        %441 = vmatprep.subr.mxu0 0.0
        %442 = vmatpush2.msra.mxu0 0.0
        %443 = vmatprep.subr.mxu0 0.0
        %444 = vmatpush2.msra.mxu0 0.0
        %445 = vmatprep.subr.mxu0 0.0
        %446 = vmatpush2.msra.mxu0 0.0
        %447 = vmatprep.subr.mxu0 0.0
        %448 = vmatpush2.msra.mxu0 0.0
        %449 = vmatprep.mubr.f32.mxu0 0.0
        %450 = vmatmul.mubr.f32.gmra.mxu0 %v379
        %v451 = vpop.f32.mrf.mxu0
        %v452 = vadd.f32 %v372, %v451
        %v453 = vpop.f32.mrf.mxu0
        %v454 = vadd.f32 %v374, %v453
        %455 = vdwg.mxu0
        %v456 = vld [vmem:[%s4] sm:$0xff]
        %458 = vset.pattern.permute.xlu0 0
        %459 = vperm.xlu0 %458, %v456
        %v460 = vpop.permute.xlu0 %459
        %v462 = vadd.f32 %v452, %v460
        %v463 = vadd.f32 %v454, %v460
        %v464 = vadd.f32 %v462, 3.0
        %v465 = vadd.f32 %v463, 3.0
        %v466 = vmax.f32 %v464, 0.0
        %v467 = vmax.f32 %v465, 0.0
        %v468 = vmin.f32 %v466, 6.0
        %v469 = vmin.f32 %v467, 6.0
        %v470 = vmul.f32 %v462, %v468
        %v471 = vmul.f32 %v463, %v469
        %v472 = vmul.f32 %v470, 0.16666667
        %v473 = vmul.f32 %v471, 0.16666667
        %474 = vst [vmem:[%s268] sm:$0xff] %v472
        %475 = vst [vmem:[%s268 + $0x8] sm:$0xff] %v473
        %s476 = sand.u32 %s160, 1
        %s477 = scalar_lea.sflag [#allocation3], %s476
        %s478 = sand.u32 %s160, 1
        %s479 = smul.addr %s478, 16
        %s480 = scalar_lea.vmem [#allocation2], %s479
        // Predicated region
        $region41: #{tpu_custom_call.1} parent=39 // pred_check
          %p481 = pneg %p170
        $region42: #{tpu_custom_call.1} parent=39 // pred_check_branch
          %483 = sbr.rel (%p481) target = $region44
        $region43: #{tpu_custom_call.1} parent=39 // pred_region
          %s484 = smul.u32 2, %s24
          %s486 = ssub.s32 256, 256
          %487 = vsyncadd %s477, %s486
          %s488 = smul.addr %s23, 2
          %s489 = sadd.s32 %s484, %s488
          %s490 = smul.addr %s489, 128
          %s491 = scalar_lea.hbm %s5, %s490
          %s493 = sshll.u32 %s480, 4
          %s494 = int_to_ptr.vmem [resolvable:$true] %s493
          %496 = dma.vmem_to_hbm [thread:$0]  %s494, 256, %s491, %s477
        $region44: #{tpu_custom_call.1} parent=39 // pred_fallthru
          _
      $region40: #{tpu_custom_call.1} parent=5 // pred_fallthru
        _
      %p497 = scmp.le.s32.totalorder 2, %s14
      // Predicated region
      $region45: #{tpu_custom_call.1} parent=5 // pred_check
        %p498 = pneg %p497
      $region46: #{tpu_custom_call.1} parent=5 // pred_check_branch
        %500 = sbr.rel (%p498) target = $region48
      $region47: #{tpu_custom_call.1} parent=5 // pred_region
        %s501 = ssub.s32 %s14, 2
        // Predicated region
        $region49: #{tpu_custom_call.1} parent=47 // pred_check
          %p502 = pneg %p176
        $region50: #{tpu_custom_call.1} parent=47 // pred_check_branch
          %504 = sbr.rel (%p502) target = $region52
        $region51: #{tpu_custom_call.1} parent=47 // pred_region
          %s505 = sand.u32 %s161, 1
          %s506 = scalar_lea.sflag [#allocation3], %s505
          %s507 = sand.u32 %s161, 1
          %s508 = smul.addr %s507, 16
          %s509 = scalar_lea.vmem [#allocation2], %s508
          %510 = dma.done %s506, 256
        $region52: #{tpu_custom_call.1} parent=47 // pred_fallthru
          _
      $region48: #{tpu_custom_call.1} parent=5 // pred_fallthru
        _
    $region6: #{tpu_custom_call.1} parent=1 // loop_footer
      %s18 = sadd.s32 1, %s14
    $region7: #{tpu_custom_call.1} parent=1 // loop_footer_branch
      %13 = sbr.rel target = $region3
    $region8: #{tpu_custom_call.1} parent=1 // loop_exit
      _
    %511 = vsyncpa [#allocation3], 1
    %s512 = scalar_lea.sflag [#allocation3], 1
    %513 = vsyncpa %s512, 1

</llo_original>
